<compile_context>
chip_gen: v7x
topology: tpu7x:2x2x1
jax: 0.10.0
libtpu: 0.0.40
codegen_flags: <defaults>
</compile_context>

<pallas_src>
import jax
import jax.numpy as jnp
from jax.experimental import pallas as pl
from jax.experimental.pallas import tpu as pltpu

HIDDEN = 256


def _round_up(n: int, m: int) -> int:
    return ((n + m - 1) // m) * m


def _choose_tile(B: int, tile_b: int) -> int:
    """Batch tile: full dim for tiny batches, else a multiple of 16 sublanes
    (bf16 packing), capped at tile_b, and split so there are >= 2 grid steps
    whenever possible (keeps both v7x TensorCores busy)."""
    if B <= 16:
        return B
    return min(tile_b, _round_up(pl.cdiv(B, 2), 16))


def _critic_kernel(x_ref, a_ref, w1x_ref, w1a_ref, b1_ref, w2_ref, b2_ref,
                   w3_ref, b3_ref, w4_ref, b4_ref, out_ref):
    # fc1: concat fused -> two bf16 MXU dots (f32 accumulation), summed.
    # 1/max_action is already folded into w1_act.
    h = jnp.dot(x_ref[...], w1x_ref[...], preferred_element_type=jnp.float32)
    h = h + jnp.dot(a_ref[...], w1a_ref[...],
                    preferred_element_type=jnp.float32)
    h = jnp.maximum(h + b1_ref[...], 0.0)

    # fc2 / fc3: bf16 operands on the MXU, f32 accumulation + f32 elementwise.
    h = jnp.dot(h.astype(jnp.bfloat16), w2_ref[...],
                preferred_element_type=jnp.float32)
    h = jnp.maximum(h + b2_ref[...], 0.0)

    h = jnp.dot(h.astype(jnp.bfloat16), w3_ref[...],
                preferred_element_type=jnp.float32)
    h = jnp.maximum(h + b3_ref[...], 0.0)

    # q_out has a single output column: VPU multiply + XLU lane reduction
    # instead of an MXU matmul that would waste 127/128 output lanes.
    q = jnp.sum(h * w4_ref[...], axis=-1, keepdims=True) + b4_ref[...]
    out_ref[...] = q.astype(out_ref.dtype)


def usher_critic_forward(x, actions, kernel_params, *, tile_b=2048):
    """x: [B, obs + 2*goal], actions: [B, action] -> q: [B, 1].

    tile_b ~2048 is safe everywhere; raise to 4096-8192 on v6e/v7x for large B.
    """
    w1x, w1a, b1, w2, b2, w3, b3, w4_row, b4 = kernel_params
    B, d_x = x.shape
    d_act = actions.shape[1]
    assert w1x.shape[0] == d_x, (w1x.shape, d_x)
    assert w1a.shape[0] == d_act, (w1a.shape, d_act)

    # mult_val in the torch code is all-ones -> identity on x.
    # Feed bf16: the kernel computes fc1 in bf16 anyway, so no numerics change,
    # but HBM input DMA and VMEM lane-padded footprint are halved.  (Ideally
    # the caller already produces bf16 so this cast fuses upstream.)
    x_b = x.astype(jnp.bfloat16)
    a_b = actions.astype(jnp.bfloat16)

    tb = _choose_tile(B, tile_b)
    grid = (pl.cdiv(B, tb),)   # ragged last block: OOB output rows are masked

    def resident(arr):
        # Constant block index across the grid -> block is not re-DMA'd between
        # consecutive steps; weights stay VMEM-resident for the whole call.
        return pl.BlockSpec(arr.shape, lambda i: (0, 0))

    q = pl.pallas_call(
        _critic_kernel,
        out_shape=jax.ShapeDtypeStruct((B, 1), jnp.float32),
        grid=grid,
        in_specs=[
            pl.BlockSpec((tb, d_x), lambda i: (i, 0)),
            pl.BlockSpec((tb, d_act), lambda i: (i, 0)),
            resident(w1x), resident(w1a), resident(b1),
            resident(w2), resident(b2),
            resident(w3), resident(b3),
            resident(w4_row), resident(b4),
        ],
        out_specs=pl.BlockSpec((tb, 1), lambda i: (i, 0)),
        compiler_params=pltpu.CompilerParams(
            dimension_semantics=("parallel",),
            # Above v5e's 16 MiB / v6e-v7x's 32 MiB default scoped limits so the
            # large-tile config fits; well under every chip's physical VMEM.
            vmem_limit_bytes=48 * 1024 * 1024),
    )(x_b, a_b, w1x, w1a, b1, w2, b2, w3, b3, w4_row, b4)
    return q


def init_params(key, obs, goal, action, hidden=HIDDEN):
    """f32 params mimicking PyTorch nn.Linear defaults (U(-1/sqrt(fan_in), .))."""
    d_x = obs + 2 * goal
    d_in = d_x + action

    def linear(key, fan_in, fan_out):
        kw, kb = jax.random.split(key)
        bound = 1.0 / jnp.sqrt(fan_in)
        w = jax.random.uniform(kw, (fan_in, fan_out), jnp.float32, -bound, bound)
        b = jax.random.uniform(kb, (fan_out,), jnp.float32, -bound, bound)
        return w, b

    k1, k2, k3, k4 = jax.random.split(key, 4)
    w1, b1 = linear(k1, d_in, hidden)      # fc1: [d_x + action, 256]
    w2, b2 = linear(k2, hidden, hidden)    # fc2
    w3, b3 = linear(k3, hidden, hidden)    # fc3
    w4, b4 = linear(k4, hidden, 1)         # q_out
    return (w1, b1, w2, b2, w3, b3, w4, b4)


def prepare_kernel_params(params, d_x, max_action):
    """One-time host-side transform: split fc1 into x/action halves, fold the
    1/max_action scale into the action half, cast weights to bf16."""
    w1, b1, w2, b2, w3, b3, w4, b4 = params
    inv_max = 1.0 / float(max_action)
    w1x = w1[:d_x, :]
    w1a = w1[d_x:, :] * inv_max
    return (
        w1x.astype(jnp.bfloat16),
        w1a.astype(jnp.bfloat16),
        b1.reshape(1, -1).astype(jnp.float32),
        w2.astype(jnp.bfloat16), b2.reshape(1, -1).astype(jnp.float32),
        w3.astype(jnp.bfloat16), b3.reshape(1, -1).astype(jnp.float32),
        w4.reshape(1, -1).astype(jnp.float32),   # q_out as f32 row vector
        b4.reshape(1, 1).astype(jnp.float32),
    )


def reference_forward(x, actions, kernel_params):
    """Plain-JAX reference mirroring the kernel's dtype handling."""
    w1x, w1a, b1, w2, b2, w3, b3, w4_row, b4 = kernel_params
    xb = x.astype(jnp.bfloat16)
    ab = actions.astype(jnp.bfloat16)
    h = jnp.dot(xb, w1x, preferred_element_type=jnp.float32)
    h = h + jnp.dot(ab, w1a, preferred_element_type=jnp.float32)
    h = jax.nn.relu(h + b1)
    h = jax.nn.relu(jnp.dot(h.astype(jnp.bfloat16), w2,
                            preferred_element_type=jnp.float32) + b2)
    h = jax.nn.relu(jnp.dot(h.astype(jnp.bfloat16), w3,
                            preferred_element_type=jnp.float32) + b3)
    return jnp.sum(h * w4_row, axis=-1, keepdims=True) + b4


if __name__ == "__main__":
    # env_params: obs=10, goal=3, action=4, action_max=2.0
    obs, goal, action = 10, 3, 4
    max_action = 2.0
    d_x = obs + 2 * goal  # 16

    key = jax.random.PRNGKey(0)
    k_params, k_x, k_a, k_x2, k_a2 = jax.random.split(key, 5)

    raw_params = init_params(k_params, obs, goal, action)
    kparams = prepare_kernel_params(raw_params, d_x, max_action)

    # Small-batch test (single full-batch block).
    B = 8
    x = jax.random.normal(k_x, (B, d_x), jnp.float32)
    actions = jax.random.uniform(k_a, (B, action), jnp.float32,
                                 -max_action, max_action)
    q = jax.block_until_ready(usher_critic_forward(x, actions, kparams))
    q_ref = reference_forward(x, actions, kparams)
    assert q.shape == (B, 1), q.shape
    assert jnp.allclose(q, q_ref, atol=5e-3, rtol=5e-3), (q, q_ref)

    # Larger, non-multiple batch: exercises the 2-step grid with a ragged,
    # masked last output block (no padding, no slicing in the wrapper).
    B2 = 40
    x2 = jax.random.normal(k_x2, (B2, d_x), jnp.float32)
    a2 = jax.random.uniform(k_a2, (B2, action), jnp.float32,
                            -max_action, max_action)
    q2 = jax.block_until_ready(usher_critic_forward(x2, a2, kparams))
    q2_ref = reference_forward(x2, a2, kparams)
    assert q2.shape == (B2, 1), q2.shape
    assert jnp.allclose(q2, q2_ref, atol=5e-3, rtol=5e-3), (q2, q2_ref)

    print("KERNEL_OK")
</pallas_src>

<mosaic_0001>
module attributes {stable_mosaic.version = 11 : i64} {
  func.func @_critic_kernel(%arg0: i32, %arg1: memref<8x16xbf16, #tpu.memory_space<vmem>>, %arg2: memref<8x4xbf16, #tpu.memory_space<vmem>>, %arg3: memref<16x256xbf16, #tpu.memory_space<vmem>>, %arg4: memref<4x256xbf16, #tpu.memory_space<vmem>>, %arg5: memref<1x256xf32, #tpu.memory_space<vmem>>, %arg6: memref<256x256xbf16, #tpu.memory_space<vmem>>, %arg7: memref<1x256xf32, #tpu.memory_space<vmem>>, %arg8: memref<256x256xbf16, #tpu.memory_space<vmem>>, %arg9: memref<1x256xf32, #tpu.memory_space<vmem>>, %arg10: memref<1x256xf32, #tpu.memory_space<vmem>>, %arg11: memref<1x1xf32, #tpu.memory_space<vmem>>, %arg12: memref<8x1xf32, #tpu.memory_space<vmem>>) attributes {dimension_semantics = [#tpu.dimension_semantics<parallel>], iteration_bounds = array<i64: 1>, scalar_prefetch = 0 : i64, scratch_operands = 0 : i64, tpu.core_type = #tpu.core_type<tc>, window_params = [{transform_indices = @transform_0, window_bounds = array<i64: 8, 16>}, {transform_indices = @transform_1, window_bounds = array<i64: 8, 4>}, {pipeline_mode = #tpu.pipeline_mode<synchronous>, transform_indices = @transform_2, window_bounds = array<i64: 16, 256>}, {pipeline_mode = #tpu.pipeline_mode<synchronous>, transform_indices = @transform_3, window_bounds = array<i64: 4, 256>}, {pipeline_mode = #tpu.pipeline_mode<synchronous>, transform_indices = @transform_4, window_bounds = array<i64: 1, 256>}, {pipeline_mode = #tpu.pipeline_mode<synchronous>, transform_indices = @transform_5, window_bounds = array<i64: 256, 256>}, {pipeline_mode = #tpu.pipeline_mode<synchronous>, transform_indices = @transform_6, window_bounds = array<i64: 1, 256>}, {pipeline_mode = #tpu.pipeline_mode<synchronous>, transform_indices = @transform_7, window_bounds = array<i64: 256, 256>}, {pipeline_mode = #tpu.pipeline_mode<synchronous>, transform_indices = @transform_8, window_bounds = array<i64: 1, 256>}, {pipeline_mode = #tpu.pipeline_mode<synchronous>, transform_indices = @transform_9, window_bounds = array<i64: 1, 256>}, {pipeline_mode = #tpu.pipeline_mode<synchronous>, transform_indices = @transform_10, window_bounds = array<i64: 1, 1>}, {transform_indices = @transform_11, window_bounds = array<i64: 8, 1>}]} {
    %c0 = arith.constant 0 : index
    %c0_0 = arith.constant 0 : index
    %0 = vector.load %arg1[%c0, %c0_0] : memref<8x16xbf16, #tpu.memory_space<vmem>>, vector<8x16xbf16>
    %c0_1 = arith.constant 0 : index
    %c0_2 = arith.constant 0 : index
    %1 = vector.load %arg3[%c0_1, %c0_2] : memref<16x256xbf16, #tpu.memory_space<vmem>>, vector<16x256xbf16>
    %cst = arith.constant dense<0.000000e+00> : vector<8x256xf32>
    %2 = tpu.matmul %0, %1, %cst {dimension_numbers = #tpu.dot_dimension_numbers<[1], [0], [0], [1], [0, 0, 1, 1], [], []>} : vector<8x16xbf16>, vector<16x256xbf16>, vector<8x256xf32> -> vector<8x256xf32>
    %c0_3 = arith.constant 0 : index
    %c0_4 = arith.constant 0 : index
    %3 = vector.load %arg2[%c0_3, %c0_4] : memref<8x4xbf16, #tpu.memory_space<vmem>>, vector<8x4xbf16>
    %c0_5 = arith.constant 0 : index
    %c0_6 = arith.constant 0 : index
    %4 = vector.load %arg4[%c0_5, %c0_6] : memref<4x256xbf16, #tpu.memory_space<vmem>>, vector<4x256xbf16>
    %cst_7 = arith.constant dense<0.000000e+00> : vector<8x256xf32>
    %5 = tpu.matmul %3, %4, %cst_7 {dimension_numbers = #tpu.dot_dimension_numbers<[1], [0], [0], [1], [0, 0, 1, 1], [], []>} : vector<8x4xbf16>, vector<4x256xbf16>, vector<8x256xf32> -> vector<8x256xf32>
    %6 = arith.addf %2, %5 : vector<8x256xf32>
    %c0_8 = arith.constant 0 : index
    %c0_9 = arith.constant 0 : index
    %7 = vector.load %arg5[%c0_8, %c0_9] : memref<1x256xf32, #tpu.memory_space<vmem>>, vector<1x256xf32>
    %8 = vector.broadcast %7 : vector<1x256xf32> to vector<8x256xf32>
    %9 = arith.addf %6, %8 : vector<8x256xf32>
    %cst_10 = arith.constant 0.000000e+00 : f32
    %10 = vector.broadcast %cst_10 : f32 to vector<8x256xf32>
    %11 = arith.maximumf %9, %10 : vector<8x256xf32>
    %12 = arith.truncf %11 : vector<8x256xf32> to vector<8x256xbf16>
    %c0_11 = arith.constant 0 : index
    %c0_12 = arith.constant 0 : index
    %13 = vector.load %arg6[%c0_11, %c0_12] : memref<256x256xbf16, #tpu.memory_space<vmem>>, vector<256x256xbf16>
    %cst_13 = arith.constant dense<0.000000e+00> : vector<8x256xf32>
    %14 = tpu.matmul %12, %13, %cst_13 {dimension_numbers = #tpu.dot_dimension_numbers<[1], [0], [0], [1], [0, 0, 1, 1], [], []>} : vector<8x256xbf16>, vector<256x256xbf16>, vector<8x256xf32> -> vector<8x256xf32>
    %c0_14 = arith.constant 0 : index
    %c0_15 = arith.constant 0 : index
    %15 = vector.load %arg7[%c0_14, %c0_15] : memref<1x256xf32, #tpu.memory_space<vmem>>, vector<1x256xf32>
    %16 = vector.broadcast %15 : vector<1x256xf32> to vector<8x256xf32>
    %17 = arith.addf %14, %16 : vector<8x256xf32>
    %cst_16 = arith.constant 0.000000e+00 : f32
    %18 = vector.broadcast %cst_16 : f32 to vector<8x256xf32>
    %19 = arith.maximumf %17, %18 : vector<8x256xf32>
    %20 = arith.truncf %19 : vector<8x256xf32> to vector<8x256xbf16>
    %c0_17 = arith.constant 0 : index
    %c0_18 = arith.constant 0 : index
    %21 = vector.load %arg8[%c0_17, %c0_18] : memref<256x256xbf16, #tpu.memory_space<vmem>>, vector<256x256xbf16>
    %cst_19 = arith.constant dense<0.000000e+00> : vector<8x256xf32>
    %22 = tpu.matmul %20, %21, %cst_19 {dimension_numbers = #tpu.dot_dimension_numbers<[1], [0], [0], [1], [0, 0, 1, 1], [], []>} : vector<8x256xbf16>, vector<256x256xbf16>, vector<8x256xf32> -> vector<8x256xf32>
    %c0_20 = arith.constant 0 : index
    %c0_21 = arith.constant 0 : index
    %23 = vector.load %arg9[%c0_20, %c0_21] : memref<1x256xf32, #tpu.memory_space<vmem>>, vector<1x256xf32>
    %24 = vector.broadcast %23 : vector<1x256xf32> to vector<8x256xf32>
    %25 = arith.addf %22, %24 : vector<8x256xf32>
    %cst_22 = arith.constant 0.000000e+00 : f32
    %26 = vector.broadcast %cst_22 : f32 to vector<8x256xf32>
    %27 = arith.maximumf %25, %26 : vector<8x256xf32>
    %c0_23 = arith.constant 0 : index
    %c0_24 = arith.constant 0 : index
    %28 = vector.load %arg10[%c0_23, %c0_24] : memref<1x256xf32, #tpu.memory_space<vmem>>, vector<1x256xf32>
    %29 = vector.broadcast %28 : vector<1x256xf32> to vector<8x256xf32>
    %30 = arith.mulf %27, %29 : vector<8x256xf32>
    %cst_25 = arith.constant dense<0.000000e+00> : vector<8xf32>
    %31 = vector.multi_reduction <add>, %30, %cst_25 [1] : vector<8x256xf32> to vector<8xf32>
    %32 = vector.shape_cast %31 : vector<8xf32> to vector<8x1xf32>
    %c0_26 = arith.constant 0 : index
    %c0_27 = arith.constant 0 : index
    %33 = vector.load %arg11[%c0_26, %c0_27] : memref<1x1xf32, #tpu.memory_space<vmem>>, vector<1x1xf32>
    %34 = vector.broadcast %33 : vector<1x1xf32> to vector<8x1xf32>
    %35 = arith.addf %32, %34 : vector<8x1xf32>
    %c0_28 = arith.constant 0 : index
    %c0_29 = arith.constant 0 : index
    %36 = vector.load %arg12[%c0_28, %c0_29] : memref<8x1xf32, #tpu.memory_space<vmem>>, vector<8x1xf32>
    tpu.vector_store %arg12[%c0_28, %c0_29], %35 {strides = array<i32>} : memref<8x1xf32, #tpu.memory_space<vmem>>, vector<8x1xf32>,
    return
  }
  func.func @transform_0(%arg0: i32) -> (i32, i32) {
    %c0_i32 = arith.constant 0 : i32
    %c0_i32_0 = arith.constant 0 : i32
    return %arg0, %c0_i32 : i32, i32
  }
  func.func @transform_1(%arg0: i32) -> (i32, i32) {
    %c0_i32 = arith.constant 0 : i32
    %c0_i32_0 = arith.constant 0 : i32
    return %arg0, %c0_i32 : i32, i32
  }
  func.func @transform_2(%arg0: i32) -> (i32, i32) {
    %c0_i32 = arith.constant 0 : i32
    %c0_i32_0 = arith.constant 0 : i32
    %c0_i32_1 = arith.constant 0 : i32
    return %c0_i32, %c0_i32_0 : i32, i32
  }
  func.func @transform_3(%arg0: i32) -> (i32, i32) {
    %c0_i32 = arith.constant 0 : i32
    %c0_i32_0 = arith.constant 0 : i32
    %c0_i32_1 = arith.constant 0 : i32
    return %c0_i32, %c0_i32_0 : i32, i32
  }
  func.func @transform_4(%arg0: i32) -> (i32, i32) {
    %c0_i32 = arith.constant 0 : i32
    %c0_i32_0 = arith.constant 0 : i32
    %c0_i32_1 = arith.constant 0 : i32
    return %c0_i32, %c0_i32_0 : i32, i32
  }
  func.func @transform_5(%arg0: i32) -> (i32, i32) {
    %c0_i32 = arith.constant 0 : i32
    %c0_i32_0 = arith.constant 0 : i32
    %c0_i32_1 = arith.constant 0 : i32
    return %c0_i32, %c0_i32_0 : i32, i32
  }
  func.func @transform_6(%arg0: i32) -> (i32, i32) {
    %c0_i32 = arith.constant 0 : i32
    %c0_i32_0 = arith.constant 0 : i32
    %c0_i32_1 = arith.constant 0 : i32
    return %c0_i32, %c0_i32_0 : i32, i32
  }
  func.func @transform_7(%arg0: i32) -> (i32, i32) {
    %c0_i32 = arith.constant 0 : i32
    %c0_i32_0 = arith.constant 0 : i32
    %c0_i32_1 = arith.constant 0 : i32
    return %c0_i32, %c0_i32_0 : i32, i32
  }
  func.func @transform_8(%arg0: i32) -> (i32, i32) {
    %c0_i32 = arith.constant 0 : i32
    %c0_i32_0 = arith.constant 0 : i32
    %c0_i32_1 = arith.constant 0 : i32
    return %c0_i32, %c0_i32_0 : i32, i32
  }
  func.func @transform_9(%arg0: i32) -> (i32, i32) {
    %c0_i32 = arith.constant 0 : i32
    %c0_i32_0 = arith.constant 0 : i32
    %c0_i32_1 = arith.constant 0 : i32
    return %c0_i32, %c0_i32_0 : i32, i32
  }
  func.func @transform_10(%arg0: i32) -> (i32, i32) {
    %c0_i32 = arith.constant 0 : i32
    %c0_i32_0 = arith.constant 0 : i32
    %c0_i32_1 = arith.constant 0 : i32
    return %c0_i32, %c0_i32_0 : i32, i32
  }
  func.func @transform_11(%arg0: i32) -> (i32, i32) {
    %c0_i32 = arith.constant 0 : i32
    %c0_i32_0 = arith.constant 0 : i32
    return %arg0, %c0_i32 : i32, i32
  }
}

</mosaic_0001>

<llo_original>
// kernel: tpu_custom_call.1
$region0: #{tpu_custom_call.1}
  #allocation0 [shape = 'u32[]', space=smem, size = 0x4, offset = 0x4, fixed_abs, tag = 'smem constant byte address 0x4 - core index']
  #allocation1 [shape = 'u32[144,128]{1,0:T(1,128)}', space=vmem, size = 0x12000, scoped, tag = 'internal scratch']
  #allocation2 [shape = 'f32[1,1]{1,0:T(1,128)S(1)}', space=vmem, size = 0x200, scoped, tag = 'scoped memory for tpu_custom_call.1']
  %s0 = inlined_call_operand.hbm [shape: bf16[8,16], index: 0, kind: input, shape index: {}]
  %s1 = inlined_call_operand.vmem [shape: bf16[8,4], index: 1, kind: input, shape index: {}]
  %s2 = inlined_call_operand.vmem [shape: bf16[16,256], index: 2, kind: input, shape index: {}]
  %s3 = inlined_call_operand.vmem [shape: bf16[4,256], index: 3, kind: input, shape index: {}]
  %s4 = inlined_call_operand.vmem [shape: f32[1,256], index: 4, kind: input, shape index: {}]
  %s5 = inlined_call_operand.hbm [shape: bf16[256,256], index: 5, kind: input, shape index: {}]
  %s6 = inlined_call_operand.vmem [shape: f32[1,256], index: 6, kind: input, shape index: {}]
  %s7 = inlined_call_operand.hbm [shape: bf16[256,256], index: 7, kind: input, shape index: {}]
  %s8 = inlined_call_operand.vmem [shape: f32[1,256], index: 8, kind: input, shape index: {}]
  %s9 = inlined_call_operand.vmem [shape: f32[1,256], index: 9, kind: input, shape index: {}]
  %s10 = inlined_call_operand.<no memory space> [shape: f32[1,1], index: 10, kind: input, shape index: {}]
  %s11 = inlined_call_operand.vmem [shape: f32[8,1], index: 11, kind: output, shape index: {}]
  %s12 = sld [smem:[#allocation0]]
  $region66: #{tpu_custom_call.1} parent=0
    _
  %s14 = ssub.s32 1, %s12
  %s15 = scalar_select 0, %s14, %s12
  %v16 = vstv %s10
  %17 = vst [vmem:[#allocation2] sm:$0x1] %v16
  $region1: #{tpu_custom_call.1} parent=0
    #allocation3 [shape = 'u8[2048]{0}', space=vmem, size = 0x800, scoped, tag = 'input window, operand 0, single buffered']
    #allocation4 [shape = 's32[1]{0}', space=sflag, size = 0x4, scoped, tag = 'scoped memory for tpu_custom_call.1']
    #allocation5 [shape = 'u8[131072]{0}', space=vmem, size = 0x20000, scoped, tag = 'input window, operand 5, single buffered']
    #allocation6 [shape = 's32[1]{0}', space=sflag, size = 0x4, scoped, tag = 'scoped memory for tpu_custom_call.1']
    #allocation7 [shape = 'u8[131072]{0}', space=vmem, size = 0x20000, scoped, tag = 'input window, operand 7, single buffered']
    %18 = vsyncpa [#allocation4], 0
    %19 = vsyncpa [#allocation6], 0
    // Predicated region
    $region2: #{tpu_custom_call.1} parent=1 // pred_check
      _
    $region3: #{tpu_custom_call.1} parent=1 // pred_check_branch
      %21 = sbr.rel (0) target = $region5
    $region4: #{tpu_custom_call.1} parent=1 // pred_region
      %s23 = ssub.s32 64, 64
      %24 = vsyncadd [#allocation4], %s23
      %s26 = sshll.u32 [#allocation3], 4
      %s27 = int_to_ptr.vmem [resolvable:$true] %s26
      %29 = dma.hbm_to_vmem [thread:$0]  %s0, 64, %s27, [#allocation4]
    $region5: #{tpu_custom_call.1} parent=1 // pred_fallthru
      _
    // Predicated region
    $region6: #{tpu_custom_call.1} parent=1 // pred_check
      _
    $region7: #{tpu_custom_call.1} parent=1 // pred_check_branch
      %31 = sbr.rel (0) target = $region9
    $region8: #{tpu_custom_call.1} parent=1 // pred_region
      _
    $region9: #{tpu_custom_call.1} parent=1 // pred_fallthru
      _
    // Predicated region
    $region10: #{tpu_custom_call.1} parent=1 // pred_check
      _
    $region11: #{tpu_custom_call.1} parent=1 // pred_check_branch
      %33 = sbr.rel (0) target = $region13
    $region12: #{tpu_custom_call.1} parent=1 // pred_region
      _
    $region13: #{tpu_custom_call.1} parent=1 // pred_fallthru
      _
    // Predicated region
    $region14: #{tpu_custom_call.1} parent=1 // pred_check
      _
    $region15: #{tpu_custom_call.1} parent=1 // pred_check_branch
      %35 = sbr.rel (0) target = $region17
    $region16: #{tpu_custom_call.1} parent=1 // pred_region
      _
    $region17: #{tpu_custom_call.1} parent=1 // pred_fallthru
      _
    // Predicated region
    $region18: #{tpu_custom_call.1} parent=1 // pred_check
      _
    $region19: #{tpu_custom_call.1} parent=1 // pred_check_branch
      %37 = sbr.rel (0) target = $region21
    $region20: #{tpu_custom_call.1} parent=1 // pred_region
      _
    $region21: #{tpu_custom_call.1} parent=1 // pred_fallthru
      _
    // Predicated region
    $region22: #{tpu_custom_call.1} parent=1 // pred_check
      _
    $region23: #{tpu_custom_call.1} parent=1 // pred_check_branch
      %39 = sbr.rel (0) target = $region25
    $region24: #{tpu_custom_call.1} parent=1 // pred_region
      %s41 = ssub.s32 4096, 4096
      %42 = vsyncadd [#allocation6], %s41
      %s43 = sshll.u32 [#allocation5], 4
      %s44 = int_to_ptr.vmem [resolvable:$true] %s43
      %49 = dma.hbm_to_vmem [thread:$0]  %s5, 4096, %s44, [#allocation6], 128, 128, 8
    $region25: #{tpu_custom_call.1} parent=1 // pred_fallthru
      _
    // Predicated region
    $region26: #{tpu_custom_call.1} parent=1 // pred_check
      _
    $region27: #{tpu_custom_call.1} parent=1 // pred_check_branch
      %51 = sbr.rel (0) target = $region29
    $region28: #{tpu_custom_call.1} parent=1 // pred_region
      _
    $region29: #{tpu_custom_call.1} parent=1 // pred_fallthru
      _
    // Predicated region
    $region30: #{tpu_custom_call.1} parent=1 // pred_check
      _
    $region31: #{tpu_custom_call.1} parent=1 // pred_check_branch
      %53 = sbr.rel (0) target = $region33
    $region32: #{tpu_custom_call.1} parent=1 // pred_region
      %s55 = ssub.s32 4096, 4096
      %56 = vsyncadd [#allocation6], %s55
      %s57 = sshll.u32 [#allocation7], 4
      %s58 = int_to_ptr.vmem [resolvable:$true] %s57
      %63 = dma.hbm_to_vmem [thread:$0]  %s7, 4096, %s58, [#allocation6], 128, 128, 8
    $region33: #{tpu_custom_call.1} parent=1 // pred_fallthru
      _
    // Predicated region
    $region34: #{tpu_custom_call.1} parent=1 // pred_check
      _
    $region35: #{tpu_custom_call.1} parent=1 // pred_check_branch
      %65 = sbr.rel (0) target = $region37
    $region36: #{tpu_custom_call.1} parent=1 // pred_region
      _
    $region37: #{tpu_custom_call.1} parent=1 // pred_fallthru
      _
    // Predicated region
    $region38: #{tpu_custom_call.1} parent=1 // pred_check
      _
    $region39: #{tpu_custom_call.1} parent=1 // pred_check_branch
      %67 = sbr.rel (0) target = $region41
    $region40: #{tpu_custom_call.1} parent=1 // pred_region
      _
    $region41: #{tpu_custom_call.1} parent=1 // pred_fallthru
      _
    // Predicated region
    $region42: #{tpu_custom_call.1} parent=1 // pred_check
      _
    $region43: #{tpu_custom_call.1} parent=1 // pred_check_branch
      %69 = sbr.rel (0) target = $region45
    $region44: #{tpu_custom_call.1} parent=1 // pred_region
      _
    $region45: #{tpu_custom_call.1} parent=1 // pred_fallthru
      _
    // Predicated region
    $region46: #{tpu_custom_call.1} parent=1 // pred_check
      _
    $region47: #{tpu_custom_call.1} parent=1 // pred_check_branch
      %71 = sbr.rel (0) target = $region49
    $region48: #{tpu_custom_call.1} parent=1 // pred_region
      %72 = dma.done [#allocation4], 64
    $region49: #{tpu_custom_call.1} parent=1 // pred_fallthru
      _
    // Predicated region
    $region50: #{tpu_custom_call.1} parent=1 // pred_check
      _
    $region51: #{tpu_custom_call.1} parent=1 // pred_check_branch
      %74 = sbr.rel (0) target = $region53
    $region52: #{tpu_custom_call.1} parent=1 // pred_region
      %75 = dma.done [#allocation6], 4096
    $region53: #{tpu_custom_call.1} parent=1 // pred_fallthru
      _
    // Predicated region
    $region54: #{tpu_custom_call.1} parent=1 // pred_check
      _
    $region55: #{tpu_custom_call.1} parent=1 // pred_check_branch
      %77 = sbr.rel (0) target = $region57
    $region56: #{tpu_custom_call.1} parent=1 // pred_region
      %78 = dma.done [#allocation6], 4096
    $region57: #{tpu_custom_call.1} parent=1 // pred_fallthru
      _
    %v80 = vld [vmem:[#allocation3] sm:$0xf]
    %v81 = vld [vmem:[%s2] sm:$0xff]
    %v82 = vld [vmem:[%s2 + $0x8] sm:$0xff]
    %v83 = vld [vmem:[%s1] sm:$0xf]
    %v84 = vld [vmem:[%s3] sm:$0xf]
    %v87 = vunpack.c.l.s4 1983009808
    %v88 = vunpack.c.0.s8 %v87
    %v89 = vlaneseq
    %v90 = vshrl.u32 %v89, 7
    %v91 = vsub.s32 %v88, %v90
    %v92 = vrot.slane %v84, %v91
    %v93 = vcombine.high %v92, %v92
    %vm94 = vcmask 31744
    %v96 = vsel %vm94, %v83, 0
    %vm98 = vcmask 1041408
    %v100 = vsel %vm98, %v92, 0
    %v103 = vsel %vm98, %v93, 0
    %105 = vmatprep.subr.bf16.mxu0 %v103
    %106 = vmatpush1.bf16.msra.mxu0 %v100
    %107 = vmatprep.subr.bf16.mxu0 0
    %108 = vmatpush1.bf16.msra.mxu0 0
    %109 = vmatprep.subr.bf16.mxu0 0
    %110 = vmatpush1.bf16.msra.mxu0 0
    %111 = vmatprep.subr.bf16.mxu0 0
    %112 = vmatpush1.bf16.msra.mxu0 0
    %113 = vmatprep.subr.bf16.mxu0 0
    %114 = vmatpush1.bf16.msra.mxu0 0
    %115 = vmatprep.subr.bf16.mxu0 0
    %116 = vmatpush1.bf16.msra.mxu0 0
    %117 = vmatprep.subr.bf16.mxu0 0
    %118 = vmatpush1.bf16.msra.mxu0 0
    %119 = vmatprep.subr.bf16.mxu0 0
    %120 = vmatpush1.bf16.msra.mxu0 0
    %121 = vmatprep.subr.bf16.mxu0 0
    %122 = vmatpush1.bf16.msra.mxu0 0
    %123 = vmatprep.subr.bf16.mxu0 0
    %124 = vmatpush1.bf16.msra.mxu0 0
    %125 = vmatprep.subr.bf16.mxu0 0
    %126 = vmatpush1.bf16.msra.mxu0 0
    %127 = vmatprep.subr.bf16.mxu0 0
    %128 = vmatpush1.bf16.msra.mxu0 0
    %129 = vmatprep.subr.bf16.mxu0 0
    %130 = vmatpush1.bf16.msra.mxu0 0
    %131 = vmatprep.subr.bf16.mxu0 0
    %132 = vmatpush1.bf16.msra.mxu0 0
    %133 = vmatprep.subr.bf16.mxu0 0
    %134 = vmatpush1.bf16.msra.mxu0 0
    %135 = vmatprep.subr.bf16.mxu0 0
    %136 = vmatpush1.bf16.msra.mxu0 0
    %137 = vmatprep.mubr.bf16.mxu0 0
    %138 = vmatmul.mubr.bf16.gmra.mrb[0].mxu0 %v96
    %v139 = vpop.f32.mrb[0].mxu0
    %v140 = vadd.f32 0.0, %v139
    %v141 = vpop.f32.mrb[0].mxu0
    %v142 = vadd.f32 0.0, %v141
    %v143 = vpop.f32.mrb[0].mxu0
    %v144 = vpop.f32.mrb[0].mxu0
    %145 = vdwg.mxu0
    %v148 = vunpack.c.l.b16 %v81
    %v149 = vunpack.c.h.b16 %v81
    %v150 = vunpack.c.l.b16 %v82
    %v151 = vunpack.c.h.b16 %v82
    %v152 = vpack.c.b16 %v150, %v148
    %v153 = vpack.c.b16 %v151, %v149
    %vm156 = vcmask 130048
    %v158 = vsel %vm156, %v80, 0
    %160 = vmatprep.subr.bf16.mxu0 %v153
    %161 = vmatpush1.bf16.msra.mxu0 %v152
    %162 = vmatprep.subr.bf16.mxu0 0
    %163 = vmatpush1.bf16.msra.mxu0 0
    %164 = vmatprep.subr.bf16.mxu0 0
    %165 = vmatpush1.bf16.msra.mxu0 0
    %166 = vmatprep.subr.bf16.mxu0 0
    %167 = vmatpush1.bf16.msra.mxu0 0
    %168 = vmatprep.subr.bf16.mxu0 0
    %169 = vmatpush1.bf16.msra.mxu0 0
    %170 = vmatprep.subr.bf16.mxu0 0
    %171 = vmatpush1.bf16.msra.mxu0 0
    %172 = vmatprep.subr.bf16.mxu0 0
    %173 = vmatpush1.bf16.msra.mxu0 0
    %174 = vmatprep.subr.bf16.mxu0 0
    %175 = vmatpush1.bf16.msra.mxu0 0
    %176 = vmatprep.subr.bf16.mxu0 0
    %177 = vmatpush1.bf16.msra.mxu0 0
    %178 = vmatprep.subr.bf16.mxu0 0
    %179 = vmatpush1.bf16.msra.mxu0 0
    %180 = vmatprep.subr.bf16.mxu0 0
    %181 = vmatpush1.bf16.msra.mxu0 0
    %182 = vmatprep.subr.bf16.mxu0 0
    %183 = vmatpush1.bf16.msra.mxu0 0
    %184 = vmatprep.subr.bf16.mxu0 0
    %185 = vmatpush1.bf16.msra.mxu0 0
    %186 = vmatprep.subr.bf16.mxu0 0
    %187 = vmatpush1.bf16.msra.mxu0 0
    %188 = vmatprep.subr.bf16.mxu0 0
    %189 = vmatpush1.bf16.msra.mxu0 0
    %190 = vmatprep.subr.bf16.mxu0 0
    %191 = vmatpush1.bf16.msra.mxu0 0
    %192 = vmatprep.mubr.bf16.mxu0 0
    %193 = vmatmul.mubr.bf16.gmra.mrb[0].mxu0 %v158
    %v194 = vpop.f32.mrb[0].mxu0
    %v195 = vadd.f32 %v140, %v194
    %v196 = vpop.f32.mrb[0].mxu0
    %v197 = vadd.f32 %v142, %v196
    %v198 = vpop.f32.mrb[0].mxu0
    %v199 = vpop.f32.mrb[0].mxu0
    %200 = vdwg.mxu0
    %v201 = vld [vmem:[%s4] sm:$0x3]
    %v203 = vlaneseq
    %v204 = vshrl.u32 %v203, 7
    %v205 = vsub.s32 0, %v204
    %v206 = vrot.slane %v201, %v205
    %v207 = vlaneseq
    %v208 = vshrl.u32 %v207, 7
    %v209 = vsub.s32 1, %v208
    %v210 = vrot.slane %v201, %v209
    %v213 = vadd.f32 %v195, %v206
    %v214 = vadd.f32 %v197, %v210
    %v215 = vmax.f32 %v213, 0.0
    %v216 = vmax.f32 %v214, 0.0
    %v217 = vpack.c.bf16 %v215, %v215
    %v218 = vpack.c.bf16 %v216, %v216
    %v219 = vld [vmem:[#allocation5] sm:$0xff]
    %v220 = vld [vmem:[#allocation5 + $0x8] sm:$0xff]
    %v221 = vld [vmem:[#allocation5 + $0x10] sm:$0xff]
    %v222 = vld [vmem:[#allocation5 + $0x18] sm:$0xff]
    %v223 = vld [vmem:[#allocation5 + $0x20] sm:$0xff]
    %v224 = vld [vmem:[#allocation5 + $0x28] sm:$0xff]
    %v225 = vld [vmem:[#allocation5 + $0x30] sm:$0xff]
    %v226 = vld [vmem:[#allocation5 + $0x38] sm:$0xff]
    %v227 = vld [vmem:[#allocation5 + $0x40] sm:$0xff]
    %v228 = vld [vmem:[#allocation5 + $0x48] sm:$0xff]
    %v229 = vld [vmem:[#allocation5 + $0x50] sm:$0xff]
    %v230 = vld [vmem:[#allocation5 + $0x58] sm:$0xff]
    %v231 = vld [vmem:[#allocation5 + $0x60] sm:$0xff]
    %v232 = vld [vmem:[#allocation5 + $0x68] sm:$0xff]
    %v233 = vld [vmem:[#allocation5 + $0x70] sm:$0xff]
    %v234 = vld [vmem:[#allocation5 + $0x78] sm:$0xff]
    %v235 = vld [vmem:[#allocation5 + $0x80] sm:$0xff]
    %v236 = vld [vmem:[#allocation5 + $0x88] sm:$0xff]
    %v237 = vld [vmem:[#allocation5 + $0x90] sm:$0xff]
    %v238 = vld [vmem:[#allocation5 + $0x98] sm:$0xff]
    %v239 = vld [vmem:[#allocation5 + $0xa0] sm:$0xff]
    %v240 = vld [vmem:[#allocation5 + $0xa8] sm:$0xff]
    %v241 = vld [vmem:[#allocation5 + $0xb0] sm:$0xff]
    %v242 = vld [vmem:[#allocation5 + $0xb8] sm:$0xff]
    %v243 = vld [vmem:[#allocation5 + $0xc0] sm:$0xff]
    %v244 = vld [vmem:[#allocation5 + $0xc8] sm:$0xff]
    %v245 = vld [vmem:[#allocation5 + $0xd0] sm:$0xff]
    %v246 = vld [vmem:[#allocation5 + $0xd8] sm:$0xff]
    %v247 = vld [vmem:[#allocation5 + $0xe0] sm:$0xff]
    %v248 = vld [vmem:[#allocation5 + $0xe8] sm:$0xff]
    %v249 = vld [vmem:[#allocation5 + $0xf0] sm:$0xff]
    %v250 = vld [vmem:[#allocation5 + $0xf8] sm:$0xff]
    %v251 = vld [vmem:[%s6] sm:$0x3]
    %v253 = vlaneseq
    %v254 = vshrl.u32 %v253, 7
    %v255 = vsub.s32 0, %v254
    %v256 = vrot.slane %v251, %v255
    %v257 = vlaneseq
    %v258 = vshrl.u32 %v257, 7
    %v259 = vsub.s32 1, %v258
    %v260 = vrot.slane %v251, %v259
    %v295 = vunpack.c.l.b16 %v219
    %v296 = vunpack.c.h.b16 %v219
    %v297 = vunpack.c.l.b16 %v220
    %v298 = vunpack.c.h.b16 %v220
    %v299 = vunpack.c.l.b16 %v221
    %v300 = vunpack.c.h.b16 %v221
    %v301 = vunpack.c.l.b16 %v222
    %v302 = vunpack.c.h.b16 %v222
    %v303 = vunpack.c.l.b16 %v223
    %v304 = vunpack.c.h.b16 %v223
    %v305 = vunpack.c.l.b16 %v224
    %v306 = vunpack.c.h.b16 %v224
    %v307 = vunpack.c.l.b16 %v225
    %v308 = vunpack.c.h.b16 %v225
    %v309 = vunpack.c.l.b16 %v226
    %v310 = vunpack.c.h.b16 %v226
    %v311 = vunpack.c.l.b16 %v227
    %v312 = vunpack.c.h.b16 %v227
    %v313 = vunpack.c.l.b16 %v228
    %v314 = vunpack.c.h.b16 %v228
    %v315 = vunpack.c.l.b16 %v229
    %v316 = vunpack.c.h.b16 %v229
    %v317 = vunpack.c.l.b16 %v230
    %v318 = vunpack.c.h.b16 %v230
    %v319 = vunpack.c.l.b16 %v231
    %v320 = vunpack.c.h.b16 %v231
    %v321 = vunpack.c.l.b16 %v232
    %v322 = vunpack.c.h.b16 %v232
    %v323 = vunpack.c.l.b16 %v233
    %v324 = vunpack.c.h.b16 %v233
    %v325 = vunpack.c.l.b16 %v234
    %v326 = vunpack.c.h.b16 %v234
    %v327 = vunpack.c.l.b16 %v235
    %v328 = vunpack.c.h.b16 %v235
    %v329 = vunpack.c.l.b16 %v236
    %v330 = vunpack.c.h.b16 %v236
    %v331 = vunpack.c.l.b16 %v237
    %v332 = vunpack.c.h.b16 %v237
    %v333 = vunpack.c.l.b16 %v238
    %v334 = vunpack.c.h.b16 %v238
    %v335 = vunpack.c.l.b16 %v239
    %v336 = vunpack.c.h.b16 %v239
    %v337 = vunpack.c.l.b16 %v240
    %v338 = vunpack.c.h.b16 %v240
    %v339 = vunpack.c.l.b16 %v241
    %v340 = vunpack.c.h.b16 %v241
    %v341 = vunpack.c.l.b16 %v242
    %v342 = vunpack.c.h.b16 %v242
    %v343 = vunpack.c.l.b16 %v243
    %v344 = vunpack.c.h.b16 %v243
    %v345 = vunpack.c.l.b16 %v244
    %v346 = vunpack.c.h.b16 %v244
    %v347 = vunpack.c.l.b16 %v245
    %v348 = vunpack.c.h.b16 %v245
    %v349 = vunpack.c.l.b16 %v246
    %v350 = vunpack.c.h.b16 %v246
    %v351 = vunpack.c.l.b16 %v247
    %v352 = vunpack.c.h.b16 %v247
    %v353 = vunpack.c.l.b16 %v248
    %v354 = vunpack.c.h.b16 %v248
    %v355 = vunpack.c.l.b16 %v249
    %v356 = vunpack.c.h.b16 %v249
    %v357 = vunpack.c.l.b16 %v250
    %v358 = vunpack.c.h.b16 %v250
    %v359 = vpack.c.b16 %v297, %v295
    %v360 = vpack.c.b16 %v298, %v296
    %v361 = vpack.c.b16 %v301, %v299
    %v362 = vpack.c.b16 %v302, %v300
    %v363 = vpack.c.b16 %v305, %v303
    %v364 = vpack.c.b16 %v306, %v304
    %v365 = vpack.c.b16 %v309, %v307
    %v366 = vpack.c.b16 %v310, %v308
    %v367 = vpack.c.b16 %v313, %v311
    %v368 = vpack.c.b16 %v314, %v312
    %v369 = vpack.c.b16 %v317, %v315
    %v370 = vpack.c.b16 %v318, %v316
    %v371 = vpack.c.b16 %v321, %v319
    %v372 = vpack.c.b16 %v322, %v320
    %v373 = vpack.c.b16 %v325, %v323
    %v374 = vpack.c.b16 %v326, %v324
    %v375 = vpack.c.b16 %v329, %v327
    %v376 = vpack.c.b16 %v330, %v328
    %v377 = vpack.c.b16 %v333, %v331
    %v378 = vpack.c.b16 %v334, %v332
    %v379 = vpack.c.b16 %v337, %v335
    %v380 = vpack.c.b16 %v338, %v336
    %v381 = vpack.c.b16 %v341, %v339
    %v382 = vpack.c.b16 %v342, %v340
    %v383 = vpack.c.b16 %v345, %v343
    %v384 = vpack.c.b16 %v346, %v344
    %v385 = vpack.c.b16 %v349, %v347
    %v386 = vpack.c.b16 %v350, %v348
    %v387 = vpack.c.b16 %v353, %v351
    %v388 = vpack.c.b16 %v354, %v352
    %v389 = vpack.c.b16 %v357, %v355
    %v390 = vpack.c.b16 %v358, %v356
    %423 = vmatprep.subr.bf16.mxu0 %v360
    %424 = vmatpush1.bf16.msra.mxu0 %v359
    %425 = vmatprep.subr.bf16.mxu0 %v362
    %426 = vmatpush1.bf16.msra.mxu0 %v361
    %427 = vmatprep.subr.bf16.mxu0 %v364
    %428 = vmatpush1.bf16.msra.mxu0 %v363
    %429 = vmatprep.subr.bf16.mxu0 %v366
    %430 = vmatpush1.bf16.msra.mxu0 %v365
    %431 = vmatprep.subr.bf16.mxu0 %v368
    %432 = vmatpush1.bf16.msra.mxu0 %v367
    %433 = vmatprep.subr.bf16.mxu0 %v370
    %434 = vmatpush1.bf16.msra.mxu0 %v369
    %435 = vmatprep.subr.bf16.mxu0 %v372
    %436 = vmatpush1.bf16.msra.mxu0 %v371
    %437 = vmatprep.subr.bf16.mxu0 %v374
    %438 = vmatpush1.bf16.msra.mxu0 %v373
    %439 = vmatprep.subr.bf16.mxu0 %v376
    %440 = vmatpush1.bf16.msra.mxu0 %v375
    %441 = vmatprep.subr.bf16.mxu0 %v378
    %442 = vmatpush1.bf16.msra.mxu0 %v377
    %443 = vmatprep.subr.bf16.mxu0 %v380
    %444 = vmatpush1.bf16.msra.mxu0 %v379
    %445 = vmatprep.subr.bf16.mxu0 %v382
    %446 = vmatpush1.bf16.msra.mxu0 %v381
    %447 = vmatprep.subr.bf16.mxu0 %v384
    %448 = vmatpush1.bf16.msra.mxu0 %v383
    %449 = vmatprep.subr.bf16.mxu0 %v386
    %450 = vmatpush1.bf16.msra.mxu0 %v385
    %451 = vmatprep.subr.bf16.mxu0 %v388
    %452 = vmatpush1.bf16.msra.mxu0 %v387
    %453 = vmatprep.subr.bf16.mxu0 %v390
    %454 = vmatpush1.bf16.msra.mxu0 %v389
    %455 = vmatprep.mubr.bf16.mxu0 %v218
    %456 = vmatmul.mubr.bf16.gmra.mrb[0].mxu0 %v217
    %v457 = vpop.f32.mrb[0].mxu0
    %v458 = vadd.f32 %v256, %v457
    %v459 = vpop.f32.mrb[0].mxu0
    %v460 = vadd.f32 %v260, %v459
    %v461 = vpop.f32.mrb[0].mxu0
    %v462 = vpop.f32.mrb[0].mxu0
    %463 = vdwg.mxu0
    %v464 = vmax.f32 %v458, 0.0
    %v465 = vmax.f32 %v460, 0.0
    %v466 = vpack.c.bf16 %v464, %v464
    %v467 = vpack.c.bf16 %v465, %v465
    %v468 = vld [vmem:[#allocation7] sm:$0xff]
    %v469 = vld [vmem:[#allocation7 + $0x8] sm:$0xff]
    %v470 = vld [vmem:[#allocation7 + $0x10] sm:$0xff]
    %v471 = vld [vmem:[#allocation7 + $0x18] sm:$0xff]
    %v472 = vld [vmem:[#allocation7 + $0x20] sm:$0xff]
    %v473 = vld [vmem:[#allocation7 + $0x28] sm:$0xff]
    %v474 = vld [vmem:[#allocation7 + $0x30] sm:$0xff]
    %v475 = vld [vmem:[#allocation7 + $0x38] sm:$0xff]
    %v476 = vld [vmem:[#allocation7 + $0x40] sm:$0xff]
    %v477 = vld [vmem:[#allocation7 + $0x48] sm:$0xff]
    %v478 = vld [vmem:[#allocation7 + $0x50] sm:$0xff]
    %v479 = vld [vmem:[#allocation7 + $0x58] sm:$0xff]
    %v480 = vld [vmem:[#allocation7 + $0x60] sm:$0xff]
    %v481 = vld [vmem:[#allocation7 + $0x68] sm:$0xff]
    %v482 = vld [vmem:[#allocation7 + $0x70] sm:$0xff]
    %v483 = vld [vmem:[#allocation7 + $0x78] sm:$0xff]
    %v484 = vld [vmem:[#allocation7 + $0x80] sm:$0xff]
    %v485 = vld [vmem:[#allocation7 + $0x88] sm:$0xff]
    %v486 = vld [vmem:[#allocation7 + $0x90] sm:$0xff]
    %v487 = vld [vmem:[#allocation7 + $0x98] sm:$0xff]
    %v488 = vld [vmem:[#allocation7 + $0xa0] sm:$0xff]
    %v489 = vld [vmem:[#allocation7 + $0xa8] sm:$0xff]
    %v490 = vld [vmem:[#allocation7 + $0xb0] sm:$0xff]
    %v491 = vld [vmem:[#allocation7 + $0xb8] sm:$0xff]
    %v492 = vld [vmem:[#allocation7 + $0xc0] sm:$0xff]
    %v493 = vld [vmem:[#allocation7 + $0xc8] sm:$0xff]
    %v494 = vld [vmem:[#allocation7 + $0xd0] sm:$0xff]
    %v495 = vld [vmem:[#allocation7 + $0xd8] sm:$0xff]
    %v496 = vld [vmem:[#allocation7 + $0xe0] sm:$0xff]
    %v497 = vld [vmem:[#allocation7 + $0xe8] sm:$0xff]
    %v498 = vld [vmem:[#allocation7 + $0xf0] sm:$0xff]
    %v499 = vld [vmem:[#allocation7 + $0xf8] sm:$0xff]
    %v500 = vld [vmem:[%s8] sm:$0x3]
    %v502 = vlaneseq
    %v503 = vshrl.u32 %v502, 7
    %v504 = vsub.s32 0, %v503
    %v505 = vrot.slane %v500, %v504
    %v506 = vlaneseq
    %v507 = vshrl.u32 %v506, 7
    %v508 = vsub.s32 1, %v507
    %v509 = vrot.slane %v500, %v508
    %v544 = vunpack.c.l.b16 %v468
    %v545 = vunpack.c.h.b16 %v468
    %v546 = vunpack.c.l.b16 %v469
    %v547 = vunpack.c.h.b16 %v469
    %v548 = vunpack.c.l.b16 %v470
    %v549 = vunpack.c.h.b16 %v470
    %v550 = vunpack.c.l.b16 %v471
    %v551 = vunpack.c.h.b16 %v471
    %v552 = vunpack.c.l.b16 %v472
    %v553 = vunpack.c.h.b16 %v472
    %v554 = vunpack.c.l.b16 %v473
    %v555 = vunpack.c.h.b16 %v473
    %v556 = vunpack.c.l.b16 %v474
    %v557 = vunpack.c.h.b16 %v474
    %v558 = vunpack.c.l.b16 %v475
    %v559 = vunpack.c.h.b16 %v475
    %v560 = vunpack.c.l.b16 %v476
    %v561 = vunpack.c.h.b16 %v476
    %v562 = vunpack.c.l.b16 %v477
    %v563 = vunpack.c.h.b16 %v477
    %v564 = vunpack.c.l.b16 %v478
    %v565 = vunpack.c.h.b16 %v478
    %v566 = vunpack.c.l.b16 %v479
    %v567 = vunpack.c.h.b16 %v479
    %v568 = vunpack.c.l.b16 %v480
    %v569 = vunpack.c.h.b16 %v480
    %v570 = vunpack.c.l.b16 %v481
    %v571 = vunpack.c.h.b16 %v481
    %v572 = vunpack.c.l.b16 %v482
    %v573 = vunpack.c.h.b16 %v482
    %v574 = vunpack.c.l.b16 %v483
    %v575 = vunpack.c.h.b16 %v483
    %v576 = vunpack.c.l.b16 %v484
    %v577 = vunpack.c.h.b16 %v484
    %v578 = vunpack.c.l.b16 %v485
    %v579 = vunpack.c.h.b16 %v485
    %v580 = vunpack.c.l.b16 %v486
    %v581 = vunpack.c.h.b16 %v486
    %v582 = vunpack.c.l.b16 %v487
    %v583 = vunpack.c.h.b16 %v487
    %v584 = vunpack.c.l.b16 %v488
    %v585 = vunpack.c.h.b16 %v488
    %v586 = vunpack.c.l.b16 %v489
    %v587 = vunpack.c.h.b16 %v489
    %v588 = vunpack.c.l.b16 %v490
    %v589 = vunpack.c.h.b16 %v490
    %v590 = vunpack.c.l.b16 %v491
    %v591 = vunpack.c.h.b16 %v491
    %v592 = vunpack.c.l.b16 %v492
    %v593 = vunpack.c.h.b16 %v492
    %v594 = vunpack.c.l.b16 %v493
    %v595 = vunpack.c.h.b16 %v493
    %v596 = vunpack.c.l.b16 %v494
    %v597 = vunpack.c.h.b16 %v494
    %v598 = vunpack.c.l.b16 %v495
    %v599 = vunpack.c.h.b16 %v495
    %v600 = vunpack.c.l.b16 %v496
    %v601 = vunpack.c.h.b16 %v496
    %v602 = vunpack.c.l.b16 %v497
    %v603 = vunpack.c.h.b16 %v497
    %v604 = vunpack.c.l.b16 %v498
    %v605 = vunpack.c.h.b16 %v498
    %v606 = vunpack.c.l.b16 %v499
    %v607 = vunpack.c.h.b16 %v499
    %v608 = vpack.c.b16 %v546, %v544
    %v609 = vpack.c.b16 %v547, %v545
    %v610 = vpack.c.b16 %v550, %v548
    %v611 = vpack.c.b16 %v551, %v549
    %v612 = vpack.c.b16 %v554, %v552
    %v613 = vpack.c.b16 %v555, %v553
    %v614 = vpack.c.b16 %v558, %v556
    %v615 = vpack.c.b16 %v559, %v557
    %v616 = vpack.c.b16 %v562, %v560
    %v617 = vpack.c.b16 %v563, %v561
    %v618 = vpack.c.b16 %v566, %v564
    %v619 = vpack.c.b16 %v567, %v565
    %v620 = vpack.c.b16 %v570, %v568
    %v621 = vpack.c.b16 %v571, %v569
    %v622 = vpack.c.b16 %v574, %v572
    %v623 = vpack.c.b16 %v575, %v573
    %v624 = vpack.c.b16 %v578, %v576
    %v625 = vpack.c.b16 %v579, %v577
    %v626 = vpack.c.b16 %v582, %v580
    %v627 = vpack.c.b16 %v583, %v581
    %v628 = vpack.c.b16 %v586, %v584
    %v629 = vpack.c.b16 %v587, %v585
    %v630 = vpack.c.b16 %v590, %v588
    %v631 = vpack.c.b16 %v591, %v589
    %v632 = vpack.c.b16 %v594, %v592
    %v633 = vpack.c.b16 %v595, %v593
    %v634 = vpack.c.b16 %v598, %v596
    %v635 = vpack.c.b16 %v599, %v597
    %v636 = vpack.c.b16 %v602, %v600
    %v637 = vpack.c.b16 %v603, %v601
    %v638 = vpack.c.b16 %v606, %v604
    %v639 = vpack.c.b16 %v607, %v605
    %672 = vmatprep.subr.bf16.mxu0 %v609
    %673 = vmatpush1.bf16.msra.mxu0 %v608
    %674 = vmatprep.subr.bf16.mxu0 %v611
    %675 = vmatpush1.bf16.msra.mxu0 %v610
    %676 = vmatprep.subr.bf16.mxu0 %v613
    %677 = vmatpush1.bf16.msra.mxu0 %v612
    %678 = vmatprep.subr.bf16.mxu0 %v615
    %679 = vmatpush1.bf16.msra.mxu0 %v614
    %680 = vmatprep.subr.bf16.mxu0 %v617
    %681 = vmatpush1.bf16.msra.mxu0 %v616
    %682 = vmatprep.subr.bf16.mxu0 %v619
    %683 = vmatpush1.bf16.msra.mxu0 %v618
    %684 = vmatprep.subr.bf16.mxu0 %v621
    %685 = vmatpush1.bf16.msra.mxu0 %v620
    %686 = vmatprep.subr.bf16.mxu0 %v623
    %687 = vmatpush1.bf16.msra.mxu0 %v622
    %688 = vmatprep.subr.bf16.mxu0 %v625
    %689 = vmatpush1.bf16.msra.mxu0 %v624
    %690 = vmatprep.subr.bf16.mxu0 %v627
    %691 = vmatpush1.bf16.msra.mxu0 %v626
    %692 = vmatprep.subr.bf16.mxu0 %v629
    %693 = vmatpush1.bf16.msra.mxu0 %v628
    %694 = vmatprep.subr.bf16.mxu0 %v631
    %695 = vmatpush1.bf16.msra.mxu0 %v630
    %696 = vmatprep.subr.bf16.mxu0 %v633
    %697 = vmatpush1.bf16.msra.mxu0 %v632
    %698 = vmatprep.subr.bf16.mxu0 %v635
    %699 = vmatpush1.bf16.msra.mxu0 %v634
    %700 = vmatprep.subr.bf16.mxu0 %v637
    %701 = vmatpush1.bf16.msra.mxu0 %v636
    %702 = vmatprep.subr.bf16.mxu0 %v639
    %703 = vmatpush1.bf16.msra.mxu0 %v638
    %704 = vmatprep.mubr.bf16.mxu0 %v467
    %705 = vmatmul.mubr.bf16.gmra.mrb[0].mxu0 %v466
    %v706 = vpop.f32.mrb[0].mxu0
    %v707 = vadd.f32 %v505, %v706
    %v708 = vpop.f32.mrb[0].mxu0
    %v709 = vadd.f32 %v509, %v708
    %v710 = vpop.f32.mrb[0].mxu0
    %v711 = vpop.f32.mrb[0].mxu0
    %712 = vdwg.mxu0
    %v713 = vmax.f32 %v707, 0.0
    %v714 = vmax.f32 %v709, 0.0
    %v715 = vld [vmem:[%s9] sm:$0x3]
    %v717 = vlaneseq
    %v718 = vshrl.u32 %v717, 7
    %v719 = vsub.s32 0, %v718
    %v720 = vrot.slane %v715, %v719
    %v721 = vlaneseq
    %v722 = vshrl.u32 %v721, 7
    %v723 = vsub.s32 1, %v722
    %v724 = vrot.slane %v715, %v723
    %v727 = vmul.f32 %v713, %v720
    %v728 = vmul.f32 %v714, %v724
    %v729 = vadd.f32 %v727, %v728
    %730 = vadd.xlane.f32.xlu0 %v729
    %v731 = vpop.xlane.xlu0 %730
    %v732 = vld [vmem:[#allocation2] sm:$0x1]
    %v734 = vlaneseq
    %v735 = vshrl.u32 %v734, 7
    %v736 = vsub.s32 0, %v735
    %v737 = vrot.slane %v732, %v736
    %v739 = vadd.f32 %v731, %v737
    %vm740 = vcmask 7168
    %741 = vst.msk [vmem:[%s11] sm:$0xff] %vm740, %v739
    // Predicated region
    $region58: #{tpu_custom_call.1} parent=1 // pred_check
      _
    $region59: #{tpu_custom_call.1} parent=1 // pred_check_branch
      %743 = sbr.rel (0) target = $region61
    $region60: #{tpu_custom_call.1} parent=1 // pred_region
      _
    $region61: #{tpu_custom_call.1} parent=1 // pred_fallthru
      _
    // Predicated region
    $region62: #{tpu_custom_call.1} parent=1 // pred_check
      _
    $region63: #{tpu_custom_call.1} parent=1 // pred_check_branch
      %745 = sbr.rel (0) target = $region65
    $region64: #{tpu_custom_call.1} parent=1 // pred_region
      _
    $region65: #{tpu_custom_call.1} parent=1 // pred_fallthru
      _
    %746 = vsyncpa [#allocation4], 1
    %747 = vsyncpa [#allocation6], 1

</llo_original>
